<compile_context>
chip_gen: v5e
topology: v5e:2x2
jax: 0.10.0
libtpu: 0.0.40
codegen_flags: <defaults>
</compile_context>

<pallas_src>
import jax
import jax.numpy as jnp
from jax.experimental import pallas as pl
from jax.experimental.pallas import tpu as pltpu


_LANE = 128        # TPU lane width
_R_BLK = 2048      # max sublane rows per grid step (2048*128*4B = 1 MiB / array)


def _network_generator_kernel(inv_tau_ref, l0_ref, l1_ref, g0_ref, g1_ref,
                              w_ref, o_ref):
    """All blocked refs are (r_blk, 128) f32; inv_tau_ref is a (1,) SMEM scalar."""
    inv_tau = inv_tau_ref[0]
    # d = (z0 - z1) with z_i = (logit_i + gumbel_i) / tau   (pure VPU)
    d = ((l0_ref[...] - l1_ref[...]) + (g0_ref[...] - g1_ref[...])) * inv_tau
    # 2-class gumbel-softmax, class 0  ==  sigmoid(d), numerically stable with
    # a single EUP exp and an exact divide (approx reciprocal would violate 1e-5).
    e = jnp.exp(-jnp.abs(d))
    inv = 1.0 / (1.0 + e)
    y0 = jnp.where(d >= 0, inv, e * inv)
    # Blend with the learned weight; full-lane unmasked store.
    o_ref[...] = w_ref[...] * y0


def _to_slab(x, nn, nn_pad, rows):
    """Flatten (contiguous), zero-pad to nn_pad, view as (rows, 128). No transposes."""
    flat = x.reshape(nn).astype(jnp.float32)
    if nn_pad != nn:
        flat = jnp.pad(flat, (0, nn_pad - nn))
    return flat.reshape(rows, _LANE)


def split_matrix_param(matrix):
    """One-time (outside the hot path) split of the (N, N, 2) parameter into
    class-major planes, as the feedback recommends for the stored layout."""
    return matrix[..., 0], matrix[..., 1]


def network_generator_forward(logits0, logits1, weight, gumbel0, gumbel1, *,
                              tau=10.0, adj=None, batch_size=None, a=None):
    """JAX/Pallas equivalent of NetworkGenerator.forward.

    logits0/logits1: (N, N) class planes of the `matrix` parameter.
    weight:          (1, N, N) parameter.
    gumbel0/gumbel1: (N, N) standard-Gumbel noise per class (torch samples this
                     internally inside F.gumbel_softmax).
    `adj`, `batch_size`, `a` are accepted but unused, exactly as in PyTorch.
    Returns the (1, N, N) generated adjacency.
    """
    N = logits0.shape[0]
    assert logits0.shape == (N, N) and logits1.shape == (N, N)
    assert weight.shape == (1, N, N)
    assert gumbel0.shape == (N, N) and gumbel1.shape == (N, N)

    nn = N * N
    rows = -(-nn // _LANE)                      # ceil(NN / 128)
    if rows <= _R_BLK:
        r_blk = rows                            # single grid step (N=16 case)
        rows_pad = rows
    else:
        r_blk = _R_BLK                          # large-N: big (2048, 128) tiles
        rows_pad = -(-rows // _R_BLK) * _R_BLK
    nn_pad = rows_pad * _LANE
    grid = (rows_pad // r_blk,)

    l0 = _to_slab(logits0, nn, nn_pad, rows_pad)
    l1 = _to_slab(logits1, nn, nn_pad, rows_pad)
    g0 = _to_slab(gumbel0, nn, nn_pad, rows_pad)
    g1 = _to_slab(gumbel1, nn, nn_pad, rows_pad)
    w = _to_slab(weight, nn, nn_pad, rows_pad)
    inv_tau = jnp.full((1,), 1.0 / tau, dtype=jnp.float32)

    blk = pl.BlockSpec((r_blk, _LANE), lambda i: (i, 0))
    # Only shard across TensorCores when there is more than one large tile.
    semantics = ("parallel",) if grid[0] > 1 else ("arbitrary",)

    out_slab = pl.pallas_call(
        _network_generator_kernel,
        out_shape=jax.ShapeDtypeStruct((rows_pad, _LANE), jnp.float32),
        grid_spec=pltpu.PrefetchScalarGridSpec(
            num_scalar_prefetch=0,
            grid=grid,
            in_specs=[
                pl.BlockSpec(memory_space=pltpu.MemorySpace.SMEM),  # inv_tau
                blk,   # logits class 0
                blk,   # logits class 1
                blk,   # gumbel class 0
                blk,   # gumbel class 1
                blk,   # weight
            ],
            out_specs=blk,
        ),
        compiler_params=pltpu.CompilerParams(dimension_semantics=semantics),
    )(inv_tau, l0, l1, g0, g1, w)

    return out_slab.reshape(-1)[:nn].reshape(1, N, N)


def _reference(logits0, logits1, weight, gumbel0, gumbel1, tau):
    """Plain-JAX mirror of the PyTorch forward (same gumbel noise)."""
    N = logits0.shape[0]
    z = jnp.stack([(logits0 + gumbel0), (logits1 + gumbel1)], axis=-1) / tau
    y0 = jax.nn.softmax(z.reshape(-1, 2), axis=1)[:, 0]
    return weight * y0.reshape(1, N, N)


if __name__ == "__main__":
    N = 16          # num_nodes
    tau = 10.0      # NetworkGenerator.__init__ default (before any drop_temp)

    key = jax.random.PRNGKey(0)
    kw, kg = jax.random.split(key, 2)

    # nn.Parameter(torch.ones(num_nodes, num_nodes, 2)), split class-major once.
    matrix = jnp.ones((N, N, 2), dtype=jnp.float32)
    logits0, logits1 = split_matrix_param(matrix)
    # nn.Parameter(torch.randn(1, num_nodes, num_nodes))
    weight = jax.random.normal(kw, (1, N, N), dtype=jnp.float32)
    # Gumbel(0, 1) noise that F.gumbel_softmax draws internally — generated
    # directly in the class-split layout (i.i.d., no transpose needed).
    gumbel = jax.random.gumbel(kg, (2, N, N), dtype=jnp.float32)
    gumbel0, gumbel1 = gumbel[0], gumbel[1]

    out = network_generator_forward(logits0, logits1, weight, gumbel0, gumbel1,
                                    tau=tau, adj=None, batch_size=2, a=None)
    out = jax.block_until_ready(out)

    ref = _reference(logits0, logits1, weight, gumbel0, gumbel1, tau)
    if out.shape != (1, N, N):
        raise AssertionError(f"unexpected output shape {out.shape}")
    if not jnp.allclose(out, ref, atol=1e-5, rtol=1e-5):
        raise AssertionError("Pallas kernel output does not match reference")

    print("KERNEL_OK")
</pallas_src>

<mosaic_0001>
module attributes {stable_mosaic.version = 11 : i64} {
  func.func @_network_generator_kernel(%arg0: i32, %arg1: memref<1xf32, #tpu.memory_space<smem>>, %arg2: memref<2x128xf32, #tpu.memory_space<vmem>>, %arg3: memref<2x128xf32, #tpu.memory_space<vmem>>, %arg4: memref<2x128xf32, #tpu.memory_space<vmem>>, %arg5: memref<2x128xf32, #tpu.memory_space<vmem>>, %arg6: memref<2x128xf32, #tpu.memory_space<vmem>>, %arg7: memref<2x128xf32, #tpu.memory_space<vmem>>) attributes {dimension_semantics = [#tpu.dimension_semantics<arbitrary>], iteration_bounds = array<i64: 1>, scalar_prefetch = 0 : i64, scratch_operands = 0 : i64, tpu.core_type = #tpu.core_type<tc>, window_params = [{transform_indices = @transform_0, window_bounds = array<i64: 1>}, {transform_indices = @transform_1, window_bounds = array<i64: 2, 128>}, {transform_indices = @transform_2, window_bounds = array<i64: 2, 128>}, {transform_indices = @transform_3, window_bounds = array<i64: 2, 128>}, {transform_indices = @transform_4, window_bounds = array<i64: 2, 128>}, {transform_indices = @transform_5, window_bounds = array<i64: 2, 128>}, {transform_indices = @transform_6, window_bounds = array<i64: 2, 128>}]} {
    %c0 = arith.constant 0 : index
    %0 = memref.load %arg1[%c0] : memref<1xf32, #tpu.memory_space<smem>>
    %c0_0 = arith.constant 0 : index
    %c0_1 = arith.constant 0 : index
    %1 = vector.load %arg2[%c0_0, %c0_1] : memref<2x128xf32, #tpu.memory_space<vmem>>, vector<2x128xf32>
    %c0_2 = arith.constant 0 : index
    %c0_3 = arith.constant 0 : index
    %2 = vector.load %arg3[%c0_2, %c0_3] : memref<2x128xf32, #tpu.memory_space<vmem>>, vector<2x128xf32>
    %3 = arith.subf %1, %2 : vector<2x128xf32>
    %c0_4 = arith.constant 0 : index
    %c0_5 = arith.constant 0 : index
    %4 = vector.load %arg4[%c0_4, %c0_5] : memref<2x128xf32, #tpu.memory_space<vmem>>, vector<2x128xf32>
    %c0_6 = arith.constant 0 : index
    %c0_7 = arith.constant 0 : index
    %5 = vector.load %arg5[%c0_6, %c0_7] : memref<2x128xf32, #tpu.memory_space<vmem>>, vector<2x128xf32>
    %6 = arith.subf %4, %5 : vector<2x128xf32>
    %7 = arith.addf %3, %6 : vector<2x128xf32>
    %8 = vector.broadcast %0 : f32 to vector<2x128xf32>
    %9 = arith.mulf %7, %8 : vector<2x128xf32>
    %10 = math.absf %9 : vector<2x128xf32>
    %cst = arith.constant 0.000000e+00 : f32
    %11 = vector.broadcast %cst : f32 to vector<2x128xf32>
    %12 = arith.subf %11, %10 : vector<2x128xf32>
    %13 = math.exp %12 : vector<2x128xf32>
    %cst_8 = arith.constant 1.000000e+00 : f32
    %14 = vector.broadcast %cst_8 : f32 to vector<2x128xf32>
    %15 = arith.addf %14, %13 : vector<2x128xf32>
    %cst_9 = arith.constant 1.000000e+00 : f32
    %16 = vector.broadcast %cst_9 : f32 to vector<2x128xf32>
    %17 = arith.divf %16, %15 : vector<2x128xf32>
    %cst_10 = arith.constant 0.000000e+00 : f32
    %18 = vector.broadcast %cst_10 : f32 to vector<2x128xf32>
    %19 = arith.cmpf oge, %9, %18 : vector<2x128xf32>
    %20 = arith.mulf %13, %17 : vector<2x128xf32>
    %21 = arith.select %19, %17, %20 : vector<2x128xi1>, vector<2x128xf32>
    %c0_11 = arith.constant 0 : index
    %c0_12 = arith.constant 0 : index
    %22 = vector.load %arg6[%c0_11, %c0_12] : memref<2x128xf32, #tpu.memory_space<vmem>>, vector<2x128xf32>
    %23 = arith.mulf %22, %21 : vector<2x128xf32>
    %c0_13 = arith.constant 0 : index
    %c0_14 = arith.constant 0 : index
    %24 = vector.load %arg7[%c0_13, %c0_14] : memref<2x128xf32, #tpu.memory_space<vmem>>, vector<2x128xf32>
    tpu.vector_store %arg7[%c0_13, %c0_14], %23 {strides = array<i32>} : memref<2x128xf32, #tpu.memory_space<vmem>>, vector<2x128xf32>,
    return
  }
  func.func @transform_0(%arg0: i32) -> i32 {
    %c0_i32 = arith.constant 0 : i32
    %c0_i32_0 = arith.constant 0 : i32
    return %c0_i32 : i32
  }
  func.func @transform_1(%arg0: i32) -> (i32, i32) {
    %c0_i32 = arith.constant 0 : i32
    %c0_i32_0 = arith.constant 0 : i32
    return %arg0, %c0_i32 : i32, i32
  }
  func.func @transform_2(%arg0: i32) -> (i32, i32) {
    %c0_i32 = arith.constant 0 : i32
    %c0_i32_0 = arith.constant 0 : i32
    return %arg0, %c0_i32 : i32, i32
  }
  func.func @transform_3(%arg0: i32) -> (i32, i32) {
    %c0_i32 = arith.constant 0 : i32
    %c0_i32_0 = arith.constant 0 : i32
    return %arg0, %c0_i32 : i32, i32
  }
  func.func @transform_4(%arg0: i32) -> (i32, i32) {
    %c0_i32 = arith.constant 0 : i32
    %c0_i32_0 = arith.constant 0 : i32
    return %arg0, %c0_i32 : i32, i32
  }
  func.func @transform_5(%arg0: i32) -> (i32, i32) {
    %c0_i32 = arith.constant 0 : i32
    %c0_i32_0 = arith.constant 0 : i32
    return %arg0, %c0_i32 : i32, i32
  }
  func.func @transform_6(%arg0: i32) -> (i32, i32) {
    %c0_i32 = arith.constant 0 : i32
    %c0_i32_0 = arith.constant 0 : i32
    return %arg0, %c0_i32 : i32, i32
  }
}

</mosaic_0001>

<llo_original>
// kernel: tpu_custom_call.1
$region0: #{tpu_custom_call.1}
  #allocation0 [shape = 'u32[]', space=smem, size = 0x4, offset = 0x4, fixed_abs, tag = 'smem constant byte address 0x4 - core index']
  #allocation1 [shape = 'u32[72,128]{1,0:T(1,128)}', space=vmem, size = 0x9000, scoped, tag = 'internal scratch']
  #allocation2 [shape = 'f32[1]{0:T(128)S(6)}', space=smem, size = 0x200, scoped, tag = 'scoped memory for tpu_custom_call.1']
  %s0 = inlined_call_operand.<no memory space> [shape: f32[1], index: 0, kind: input, shape index: {}]
  %s1 = inlined_call_operand.vmem [shape: f32[2,128], index: 1, kind: input, shape index: {}]
  %s2 = inlined_call_operand.hbm [shape: f32[2,128], index: 2, kind: input, shape index: {}]
  %s3 = inlined_call_operand.hbm [shape: f32[2,128], index: 3, kind: input, shape index: {}]
  %s4 = inlined_call_operand.vmem [shape: f32[2,128], index: 4, kind: input, shape index: {}]
  %s5 = inlined_call_operand.hbm [shape: f32[2,128], index: 5, kind: input, shape index: {}]
  %s6 = inlined_call_operand.hbm [shape: f32[2,128], index: 6, kind: output, shape index: {}]
  %s7 = sld [smem:[#allocation0]]
  $region46: #{tpu_custom_call.1} parent=0
    _
  %s9 = ssub.s32 1, %s7
  %s10 = scalar_select 0, %s9, %s7
  %11 = sst [smem:[#allocation2]] %s0
  $region1: #{tpu_custom_call.1} parent=0
    #allocation3 [shape = 'u8[1024]{0}', space=vmem, size = 0x400, scoped, tag = 'input window, operand 2, single buffered']
    #allocation4 [shape = 's32[1]{0}', space=sflag, size = 0x4, scoped, tag = 'scoped memory for tpu_custom_call.1']
    #allocation5 [shape = 's32[1]{0}', space=sflag, size = 0x4, scoped, tag = 'scoped memory for tpu_custom_call.1']
    #allocation6 [shape = 'u8[1024]{0}', space=vmem, size = 0x400, scoped, tag = 'input window, operand 3, single buffered']
    #allocation7 [shape = 's32[1]{0}', space=sflag, size = 0x4, scoped, tag = 'scoped memory for tpu_custom_call.1']
    #allocation8 [shape = 'u8[1024]{0}', space=vmem, size = 0x400, scoped, tag = 'input window, operand 5, single buffered']
    #allocation9 [shape = 'u8[1024]{0}', space=vmem, size = 0x400, scoped, tag = 'output window, operand 0, single buffered']
    %12 = vsyncpa [#allocation4], 0
    %13 = vsyncpa [#allocation7], 0
    %14 = vsyncpa [#allocation5], 0
    // Predicated region
    $region2: #{tpu_custom_call.1} parent=1 // pred_check
      _
    $region3: #{tpu_custom_call.1} parent=1 // pred_check_branch
      %16 = sbr.rel (0) target = $region5
    $region4: #{tpu_custom_call.1} parent=1 // pred_region
      _
    $region5: #{tpu_custom_call.1} parent=1 // pred_fallthru
      _
    // Predicated region
    $region6: #{tpu_custom_call.1} parent=1 // pred_check
      _
    $region7: #{tpu_custom_call.1} parent=1 // pred_check_branch
      %18 = sbr.rel (0) target = $region9
    $region8: #{tpu_custom_call.1} parent=1 // pred_region
      _
    $region9: #{tpu_custom_call.1} parent=1 // pred_fallthru
      _
    // Predicated region
    $region10: #{tpu_custom_call.1} parent=1 // pred_check
      _
    $region11: #{tpu_custom_call.1} parent=1 // pred_check_branch
      %20 = sbr.rel (0) target = $region13
    $region12: #{tpu_custom_call.1} parent=1 // pred_region
      %22 = vsyncadd [#allocation4], 0
      %s24 = sshll.u32 %s2, 4
      %s25 = int_to_ptr.hbm [resolvable:$true] %s24
      %s26 = sshll.u32 [#allocation3], 4
      %s27 = int_to_ptr.vmem [resolvable:$true] %s26
      %29 = dma.hbm_to_vmem [thread:$0]  %s25, 32, %s27, [#allocation4]
    $region13: #{tpu_custom_call.1} parent=1 // pred_fallthru
      _
    // Predicated region
    $region14: #{tpu_custom_call.1} parent=1 // pred_check
      _
    $region15: #{tpu_custom_call.1} parent=1 // pred_check_branch
      %31 = sbr.rel (0) target = $region17
    $region16: #{tpu_custom_call.1} parent=1 // pred_region
      %33 = vsyncadd [#allocation7], 0
      %s35 = sshll.u32 %s3, 4
      %s36 = int_to_ptr.hbm [resolvable:$true] %s35
      %s37 = sshll.u32 [#allocation6], 4
      %s38 = int_to_ptr.vmem [resolvable:$true] %s37
      %40 = dma.hbm_to_vmem [thread:$0]  %s36, 32, %s38, [#allocation7]
    $region17: #{tpu_custom_call.1} parent=1 // pred_fallthru
      _
    // Predicated region
    $region18: #{tpu_custom_call.1} parent=1 // pred_check
      _
    $region19: #{tpu_custom_call.1} parent=1 // pred_check_branch
      %42 = sbr.rel (0) target = $region21
    $region20: #{tpu_custom_call.1} parent=1 // pred_region
      _
    $region21: #{tpu_custom_call.1} parent=1 // pred_fallthru
      _
    // Predicated region
    $region22: #{tpu_custom_call.1} parent=1 // pred_check
      _
    $region23: #{tpu_custom_call.1} parent=1 // pred_check_branch
      %44 = sbr.rel (0) target = $region25
    $region24: #{tpu_custom_call.1} parent=1 // pred_region
      %46 = vsyncadd [#allocation7], 0
      %s48 = sshll.u32 %s5, 4
      %s49 = int_to_ptr.hbm [resolvable:$true] %s48
      %s50 = sshll.u32 [#allocation8], 4
      %s51 = int_to_ptr.vmem [resolvable:$true] %s50
      %53 = dma.hbm_to_vmem [thread:$0]  %s49, 32, %s51, [#allocation7]
    $region25: #{tpu_custom_call.1} parent=1 // pred_fallthru
      _
    // Predicated region
    $region26: #{tpu_custom_call.1} parent=1 // pred_check
      _
    $region27: #{tpu_custom_call.1} parent=1 // pred_check_branch
      %55 = sbr.rel (0) target = $region29
    $region28: #{tpu_custom_call.1} parent=1 // pred_region
      %57 = dma.done [#allocation4], 32
    $region29: #{tpu_custom_call.1} parent=1 // pred_fallthru
      _
    // Predicated region
    $region30: #{tpu_custom_call.1} parent=1 // pred_check
      _
    $region31: #{tpu_custom_call.1} parent=1 // pred_check_branch
      %59 = sbr.rel (0) target = $region33
    $region32: #{tpu_custom_call.1} parent=1 // pred_region
      %61 = dma.done [#allocation7], 32
    $region33: #{tpu_custom_call.1} parent=1 // pred_fallthru
      _
    // Predicated region
    $region34: #{tpu_custom_call.1} parent=1 // pred_check
      _
    $region35: #{tpu_custom_call.1} parent=1 // pred_check_branch
      %63 = sbr.rel (0) target = $region37
    $region36: #{tpu_custom_call.1} parent=1 // pred_region
      %65 = dma.done [#allocation7], 32
    $region37: #{tpu_custom_call.1} parent=1 // pred_fallthru
      _
    %s66 = sld [smem:[#allocation2]]
    %v67 = vld [vmem:[%s1] sm:$0x3]
    %v68 = vld [vmem:[#allocation3] sm:$0x3]
    %v69 = vsub.f32 %v67, %v68
    %v70 = vld [vmem:[#allocation6] sm:$0x3]
    %v71 = vld [vmem:[%s4] sm:$0x3]
    %v72 = vsub.f32 %v70, %v71
    %v73 = vadd.f32 %v69, %v72
    %v74 = vstv %s66
    %v75 = vmul.f32 %v73, %v74
    %v76 = vand.u32 2147483647, %v75
    %v77 = vsub.f32 0.0, %v76
    %v78 = vmul.f32 %v77, 1.442695
    %v79 = vpow.pop %v78
    %v80 = vadd.f32 %v79, 1.0
    %v81 = vrcp.pop %v80
    %v82 = vmul.f32 %v80, %v81
    %v83 = vsub.f32 1.0, %v82
    %v84 = vmul.f32 %v81, %v83
    %v85 = vadd.f32 %v81, %v84
    %vm86 = vweird.f32 %v80
    %vm87 = vweird.f32 %v81
    %vm88 = vmor %vm86, %vm87
    %v89 = vsel %vm88, %v81, %v85
    %v90 = vand.u32 2147483647, %v80
    %vm91 = vcmp.eq.f32.partialorder %v90, 8.507059e+37
    %v92 = vand.u32 %v80, 2147483648
    %v93 = vor.u32 1.1754944e-38, %v92
    %v94 = vsel %vm91, %v93, %v89
    %v95 = vmul.f32 1.0, %v94
    %vm96 = vcmp.ge.f32.partialorder %v75, 0.0
    %v97 = vmul.f32 %v79, %v95
    %v98 = vsel %vm96, %v95, %v97
    %v99 = vld [vmem:[#allocation8] sm:$0x3]
    %v100 = vmul.f32 %v99, %v98
    %101 = vst [vmem:[#allocation9] sm:$0x3] %v100
    // Predicated region
    $region38: #{tpu_custom_call.1} parent=1 // pred_check
      _
    $region39: #{tpu_custom_call.1} parent=1 // pred_check_branch
      %103 = sbr.rel (0) target = $region41
    $region40: #{tpu_custom_call.1} parent=1 // pred_region
      %105 = vsyncadd [#allocation5], 0
      %s107 = sshll.u32 [#allocation9], 4
      %s108 = int_to_ptr.vmem [resolvable:$true] %s107
      %s109 = sshll.u32 %s6, 4
      %s110 = int_to_ptr.hbm [resolvable:$true] %s109
      %112 = dma.vmem_to_hbm [thread:$0]  %s108, 32, %s110, [#allocation5]
    $region41: #{tpu_custom_call.1} parent=1 // pred_fallthru
      _
    // Predicated region
    $region42: #{tpu_custom_call.1} parent=1 // pred_check
      _
    $region43: #{tpu_custom_call.1} parent=1 // pred_check_branch
      %114 = sbr.rel (0) target = $region45
    $region44: #{tpu_custom_call.1} parent=1 // pred_region
      %116 = dma.done [#allocation5], 32
    $region45: #{tpu_custom_call.1} parent=1 // pred_fallthru
      _
    %117 = vsyncpa [#allocation4], 1
    %118 = vsyncpa [#allocation7], 1
    %119 = vsyncpa [#allocation5], 1

</llo_original>
